<compile_context>
chip_gen: v6e
topology: v6e:2x2x1
jax: 0.10.0
libtpu: 0.0.40
codegen_flags: <defaults>
</compile_context>

<pallas_src>
import functools

import jax
import jax.numpy as jnp
from jax import lax
from jax.experimental import pallas as pl
from jax.experimental.pallas import tpu as pltpu

EPS = 1e-5  # PyTorch LayerNorm default eps


# ----------------------------- small helpers --------------------------------

def _layernorm(x, g, b):
    mu = jnp.mean(x, axis=-1, keepdims=True)
    var = jnp.mean((x - mu) ** 2, axis=-1, keepdims=True)
    return (x - mu) * jax.lax.rsqrt(var + EPS) * g + b


def _vmem_limit_bytes():
    """75% of physical VMEM (48 MiB on v7x, 96 MiB on v5e/v6e), capped at 100 MiB."""
    try:
        cap = pltpu.get_tpu_info().vmem_capacity_bytes
    except Exception:
        cap = 64 * 1024 * 1024
    return min(100 * 1024 * 1024, (int(cap) * 3) // 4)


# ------------------------------- kernels ------------------------------------

def patch_embed_kernel(x_ref, g1_ref, b1_ref, w_ref, bw_ref, g2_ref, b2_ref,
                       o_ref):
    x = x_ref[...]                                   # (TM, patch_dim) f32
    xn = _layernorm(x, g1_ref[...], b1_ref[...])
    y = jnp.dot(xn.astype(jnp.bfloat16), w_ref[...],
                preferred_element_type=jnp.float32) + bw_ref[...]
    o_ref[...] = _layernorm(y, g2_ref[...], b2_ref[...])


def crate_stack_kernel(x_ref, lag_ref, lab_ref, wqkv_ref, wout_ref, bout_ref,
                       lfg_ref, lfb_ref, wff_ref, o_ref, *,
                       scale, step_size, lambd):
    d = pl.program_id(1)

    # Load the input activation block only at the first layer; afterwards the
    # activation is carried in the (grid-resident) output VMEM block.
    @pl.when(d == 0)
    def _():
        o_ref[...] = x_ref[...]

    bt = o_ref.shape[0]
    heads = wqkv_ref.shape[0]

    la_g = lag_ref[...]
    la_b = lab_ref[...]
    wqkv = wqkv_ref[...]                             # (H, D, dh)  bf16
    wout = wout_ref[...]                             # (H, dh, D)  bf16
    bout = bout_ref[...]                             # (1, D)      f32
    lf_g = lfg_ref[...]
    lf_b = lfb_ref[...]
    wff = wff_ref[...]                               # (D, D)      bf16

    def per_batch_element(b, carry):
        x = o_ref[b]                                 # (N, D) f32 carry

        # ---- PreNorm + shared-QKV multi-head attention (batched over H) ----
        xn = _layernorm(x, la_g, la_b)
        xn_b = jnp.broadcast_to(xn.astype(jnp.bfloat16)[None],
                                (heads,) + xn.shape)          # (H, N, D) bf16
        w = lax.dot_general(                                   # qkv per head
            xn_b, wqkv, (((2,), (1,)), ((0,), (0,))),
            preferred_element_type=jnp.float32)                # (H, N, dh) f32
        w_bf = w.astype(jnp.bfloat16)
        wq_bf = (w * scale).astype(jnp.bfloat16)               # scale folded in

        dots = lax.dot_general(                                # (scaled w) @ w.T
            wq_bf, w_bf, (((2,), (2,)), ((0,), (0,))),
            preferred_element_type=jnp.float32)                # (H, N, N) f32
        dots = dots - jnp.max(dots, axis=-1, keepdims=True)
        e = jnp.exp(dots)
        denom = jnp.sum(e, axis=-1, keepdims=True)             # (H, N, 1)

        aout = lax.dot_general(                                # e @ w (deferred norm)
            e.astype(jnp.bfloat16), w_bf, (((2,), (1,)), ((0,), (0,))),
            preferred_element_type=jnp.float32)                # (H, N, dh) f32
        aout = aout * pl.reciprocal(denom, approx=True)        # softmax norm

        # Per-head output projection then merge heads (== concat + Linear).
        proj = lax.dot_general(
            aout.astype(jnp.bfloat16), wout, (((2,), (1,)), ((0,), (0,))),
            preferred_element_type=jnp.float32)                # (H, N, D) f32
        attn_out = jnp.sum(proj, axis=0) + bout
        grad_x = attn_out + x                                  # residual

        # ---- PreNorm + ISTA feed-forward (fused gradient form) ----
        gn = _layernorm(grad_x, lf_g, lf_b)
        gn_bf = gn.astype(jnp.bfloat16)
        x1 = lax.dot_general(gn_bf, wff, (((1,), (1,)), ((), ())),   # gn @ W.T
                             preferred_element_type=jnp.float32)
        fused = jnp.dot((gn - x1).astype(jnp.bfloat16), wff,         # (gn-x1) @ W
                        preferred_element_type=jnp.float32)
        o_ref[b] = jnp.maximum(gn + step_size * fused - step_size * lambd, 0.0)
        return carry

    lax.fori_loop(0, bt, per_batch_element, 0)


def mlp_head_kernel(x_ref, g_ref, b_ref, w_ref, bw_ref, o_ref):
    xn = _layernorm(x_ref[...], g_ref[...], b_ref[...])
    o_ref[...] = jnp.dot(xn.astype(jnp.bfloat16), w_ref[...],
                         preferred_element_type=jnp.float32) + bw_ref[...]


# ------------------------------ wrappers -------------------------------------

def patch_embed(x2d, params):
    M, PD = x2d.shape
    D = params["pe_w"].shape[1]
    tm = M if M <= 512 else 512                      # bigger row tile (mem-bound)
    w_bf = params["pe_w"].astype(jnp.bfloat16)
    return pl.pallas_call(
        patch_embed_kernel,
        out_shape=jax.ShapeDtypeStruct((M, D), jnp.float32),
        grid=(pl.cdiv(M, tm),),
        in_specs=[
            pl.BlockSpec((tm, PD), lambda i: (i, 0)),
            pl.BlockSpec((1, PD), lambda i: (0, 0)),
            pl.BlockSpec((1, PD), lambda i: (0, 0)),
            pl.BlockSpec((PD, D), lambda i: (0, 0)),
            pl.BlockSpec((1, D), lambda i: (0, 0)),
            pl.BlockSpec((1, D), lambda i: (0, 0)),
            pl.BlockSpec((1, D), lambda i: (0, 0)),
        ],
        out_specs=pl.BlockSpec((tm, D), lambda i: (i, 0)),
        compiler_params=pltpu.CompilerParams(
            dimension_semantics=("parallel",)),
    )(x2d, params["pe_ln1_g"], params["pe_ln1_b"], w_bf,
      params["pe_b"], params["pe_ln2_g"], params["pe_ln2_b"])


def stack_layers(layers, heads):
    """Stack per-layer params along a leading depth axis; pre-reshape weights."""
    D, inner = layers[0]["wqkv"].shape
    dh = inner // heads
    return {
        "la_g": jnp.stack([l["la_g"] for l in layers]),          # (L,1,D)
        "la_b": jnp.stack([l["la_b"] for l in layers]),
        "bout": jnp.stack([l["bout"] for l in layers]),
        "lf_g": jnp.stack([l["lf_g"] for l in layers]),
        "lf_b": jnp.stack([l["lf_b"] for l in layers]),
        # wqkv[k, h*dh+d] -> (h, k, d)
        "wqkv": jnp.stack([l["wqkv"].reshape(D, heads, dh).transpose(1, 0, 2)
                           for l in layers]).astype(jnp.bfloat16),   # (L,H,D,dh)
        # wout[h*dh+d, :] -> (h, d, :)
        "wout": jnp.stack([l["wout"].reshape(heads, dh, D)
                           for l in layers]).astype(jnp.bfloat16),   # (L,H,dh,D)
        "wff": jnp.stack([l["wff"] for l in layers]).astype(jnp.bfloat16),
    }


def transformer_stack(x, st, *, scale, step_size, lambd, batch_tile=8):
    B, N, D = x.shape
    depth, heads, _, dh = st["wqkv"].shape
    # Bt batch elements share one weight DMA per layer.  At realistic batch
    # sizes (B >= 16) this also keeps >= 2 batch tiles so the parallel axis
    # can be sharded across the two v7x TensorCores.
    bt = min(batch_tile, B)
    nb = pl.cdiv(B, bt)
    kernel = functools.partial(crate_stack_kernel, scale=scale,
                               step_size=step_size, lambd=lambd)
    return pl.pallas_call(
        kernel,
        out_shape=jax.ShapeDtypeStruct((B, N, D), jnp.float32),
        grid=(nb, depth),
        in_specs=[
            pl.BlockSpec((bt, N, D), lambda i, d: (i, 0, 0)),         # x
            pl.BlockSpec((None, 1, D), lambda i, d: (d, 0, 0)),       # la_g
            pl.BlockSpec((None, 1, D), lambda i, d: (d, 0, 0)),       # la_b
            pl.BlockSpec((None, heads, D, dh), lambda i, d: (d, 0, 0, 0)),
            pl.BlockSpec((None, heads, dh, D), lambda i, d: (d, 0, 0, 0)),
            pl.BlockSpec((None, 1, D), lambda i, d: (d, 0, 0)),       # bout
            pl.BlockSpec((None, 1, D), lambda i, d: (d, 0, 0)),       # lf_g
            pl.BlockSpec((None, 1, D), lambda i, d: (d, 0, 0)),       # lf_b
            pl.BlockSpec((None, D, D), lambda i, d: (d, 0, 0)),       # wff
        ],
        out_specs=pl.BlockSpec((bt, N, D), lambda i, d: (i, 0, 0)),
        compiler_params=pltpu.CompilerParams(
            dimension_semantics=("parallel", "arbitrary"),
            vmem_limit_bytes=_vmem_limit_bytes()),
    )(x, st["la_g"], st["la_b"], st["wqkv"], st["wout"], st["bout"],
      st["lf_g"], st["lf_b"], st["wff"])


def mlp_head(x, params):
    B, D = x.shape
    C = params["head_w"].shape[1]
    c_pad = ((C + 127) // 128) * 128                 # lane-dense output
    w = jnp.pad(params["head_w"], ((0, 0), (0, c_pad - C))).astype(jnp.bfloat16)
    bw = jnp.pad(params["head_b"], ((0, 0), (0, c_pad - C)))
    tb = B if B <= 256 else 256
    out = pl.pallas_call(
        mlp_head_kernel,
        out_shape=jax.ShapeDtypeStruct((B, c_pad), jnp.float32),
        grid=(pl.cdiv(B, tb),),
        in_specs=[
            pl.BlockSpec((tb, D), lambda i: (i, 0)),
            pl.BlockSpec((1, D), lambda i: (0, 0)),
            pl.BlockSpec((1, D), lambda i: (0, 0)),
            pl.BlockSpec((D, c_pad), lambda i: (0, 0)),
            pl.BlockSpec((1, c_pad), lambda i: (0, 0)),
        ],
        out_specs=pl.BlockSpec((tb, c_pad), lambda i: (i, 0)),
        compiler_params=pltpu.CompilerParams(
            dimension_semantics=("parallel",)),
    )(x, params["head_ln_g"], params["head_ln_b"], w, bw)
    return out[:, :C]


def crate_forward(img, params, *, patch_size, heads, dim_head,
                  step_size=0.1, lambd=0.1, pool="cls", batch_tile=8):
    B, C, H, W = img.shape
    p = patch_size
    h, w = H // p, W // p
    n = h * w
    patch_dim = p * p * C
    dim = params["pe_w"].shape[1]

    # Rearrange 'b c (h p1) (w p2) -> b (h w) (p1 p2 c)'  (glue, plain JAX).
    x = img.reshape(B, C, h, p, w, p)
    x = jnp.transpose(x, (0, 2, 4, 3, 5, 1)).reshape(B, n, patch_dim)

    # Patch embedding (Pallas, tiled over rows).
    x = patch_embed(x.reshape(B * n, patch_dim), params).reshape(B, n, dim)

    # cls token + positional embedding (glue).
    cls = jnp.broadcast_to(params["cls"], (B, 1, dim))
    x = jnp.concatenate([cls, x], axis=1)
    x = x + params["pos"][:, : n + 1]

    # Fused transformer stack: one Pallas call over (batch tiles, depth),
    # activation resident in VMEM across depth, weights streamed once per tile.
    scale = float(dim_head) ** -0.5
    stacked = stack_layers(params["layers"], heads)
    x = transformer_stack(x, stacked, scale=scale, step_size=step_size,
                          lambd=lambd, batch_tile=batch_tile)

    # Pool + classification head (Pallas).
    x = x.mean(axis=1) if pool == "mean" else x[:, 0]
    return mlp_head(x, params)


# ------------------------------ parameters -----------------------------------

def init_params(key, *, patch_dim, dim, depth, heads, dim_head,
                num_classes, num_patches):
    inner = heads * dim_head
    keys = iter(jax.random.split(key, 8 + depth * 4))

    def nrm(shape, scale=0.02):
        return scale * jax.random.normal(next(keys), shape, jnp.float32)

    params = {
        "pe_ln1_g": jnp.ones((1, patch_dim), jnp.float32),
        "pe_ln1_b": jnp.zeros((1, patch_dim), jnp.float32),
        "pe_w": nrm((patch_dim, dim)),
        "pe_b": jnp.zeros((1, dim), jnp.float32),
        "pe_ln2_g": jnp.ones((1, dim), jnp.float32),
        "pe_ln2_b": jnp.zeros((1, dim), jnp.float32),
        "pos": nrm((1, num_patches + 1, dim), 1.0),
        "cls": nrm((1, 1, dim), 1.0),
        "head_ln_g": jnp.ones((1, dim), jnp.float32),
        "head_ln_b": jnp.zeros((1, dim), jnp.float32),
        "head_w": nrm((dim, num_classes)),
        "head_b": jnp.zeros((1, num_classes), jnp.float32),
        "layers": [],
    }
    for _ in range(depth):
        params["layers"].append({
            "la_g": jnp.ones((1, dim), jnp.float32),
            "la_b": jnp.zeros((1, dim), jnp.float32),
            "wqkv": nrm((dim, inner)),          # stored as (in, out)
            "wout": nrm((inner, dim)),
            "bout": jnp.zeros((1, dim), jnp.float32),
            "lf_g": jnp.ones((1, dim), jnp.float32),
            "lf_b": jnp.zeros((1, dim), jnp.float32),
            "wff": nrm((dim, dim)),             # PyTorch layout: F.linear -> x @ W.T
        })
    return params


# --------------------------------- main ---------------------------------------

if __name__ == "__main__":
    # Small, consistent shapes: image 16x16, patch 8 -> 4 patches, seq=5.
    B, C, IMG, P = 2, 3, 16, 8
    dim, depth, heads, dim_head, num_classes = 32, 2, 4, 8, 10
    num_patches = (IMG // P) * (IMG // P)
    patch_dim = C * P * P

    img = jax.random.normal(jax.random.PRNGKey(0), (B, C, IMG, IMG),
                            jnp.float32)
    params = init_params(jax.random.PRNGKey(1), patch_dim=patch_dim, dim=dim,
                         depth=depth, heads=heads, dim_head=dim_head,
                         num_classes=num_classes, num_patches=num_patches)

    logits = crate_forward(img, params, patch_size=P, heads=heads,
                           dim_head=dim_head, step_size=0.1, lambd=0.1,
                           pool="cls")
    jax.block_until_ready(logits)
    assert logits.shape == (B, num_classes)
    print("KERNEL_OK")
</pallas_src>

<mosaic_0001>
module attributes {stable_mosaic.version = 11 : i64} {
  func.func @patch_embed_kernel(%arg0: i32, %arg1: memref<8x192xf32, #tpu.memory_space<vmem>>, %arg2: memref<1x192xf32, #tpu.memory_space<vmem>>, %arg3: memref<1x192xf32, #tpu.memory_space<vmem>>, %arg4: memref<192x32xbf16, #tpu.memory_space<vmem>>, %arg5: memref<1x32xf32, #tpu.memory_space<vmem>>, %arg6: memref<1x32xf32, #tpu.memory_space<vmem>>, %arg7: memref<1x32xf32, #tpu.memory_space<vmem>>, %arg8: memref<8x32xf32, #tpu.memory_space<vmem>>) attributes {dimension_semantics = [#tpu.dimension_semantics<parallel>], iteration_bounds = array<i64: 1>, scalar_prefetch = 0 : i64, scratch_operands = 0 : i64, tpu.core_type = #tpu.core_type<tc>, window_params = [{transform_indices = @transform_0, window_bounds = array<i64: 8, 192>}, {pipeline_mode = #tpu.pipeline_mode<synchronous>, transform_indices = @transform_1, window_bounds = array<i64: 1, 192>}, {pipeline_mode = #tpu.pipeline_mode<synchronous>, transform_indices = @transform_2, window_bounds = array<i64: 1, 192>}, {pipeline_mode = #tpu.pipeline_mode<synchronous>, transform_indices = @transform_3, window_bounds = array<i64: 192, 32>}, {pipeline_mode = #tpu.pipeline_mode<synchronous>, transform_indices = @transform_4, window_bounds = array<i64: 1, 32>}, {pipeline_mode = #tpu.pipeline_mode<synchronous>, transform_indices = @transform_5, window_bounds = array<i64: 1, 32>}, {pipeline_mode = #tpu.pipeline_mode<synchronous>, transform_indices = @transform_6, window_bounds = array<i64: 1, 32>}, {transform_indices = @transform_7, window_bounds = array<i64: 8, 32>}]} {
    %c0 = arith.constant 0 : index
    %c0_0 = arith.constant 0 : index
    %0 = vector.load %arg1[%c0, %c0_0] : memref<8x192xf32, #tpu.memory_space<vmem>>, vector<8x192xf32>
    %c0_1 = arith.constant 0 : index
    %c0_2 = arith.constant 0 : index
    %1 = vector.load %arg2[%c0_1, %c0_2] : memref<1x192xf32, #tpu.memory_space<vmem>>, vector<1x192xf32>
    %c0_3 = arith.constant 0 : index
    %c0_4 = arith.constant 0 : index
    %2 = vector.load %arg3[%c0_3, %c0_4] : memref<1x192xf32, #tpu.memory_space<vmem>>, vector<1x192xf32>
    %cst = arith.constant dense<0.000000e+00> : vector<8xf32>
    %3 = vector.multi_reduction <add>, %0, %cst [1] : vector<8x192xf32> to vector<8xf32>
    %4 = vector.shape_cast %3 : vector<8xf32> to vector<8x1xf32>
    %cst_5 = arith.constant 1.920000e+02 : f32
    %5 = vector.broadcast %cst_5 : f32 to vector<8x1xf32>
    %6 = arith.divf %4, %5 : vector<8x1xf32>
    %7 = vector.broadcast %6 : vector<8x1xf32> to vector<8x192xf32>
    %8 = arith.subf %0, %7 : vector<8x192xf32>
    %9 = arith.mulf %8, %8 : vector<8x192xf32>
    %cst_6 = arith.constant dense<0.000000e+00> : vector<8xf32>
    %10 = vector.multi_reduction <add>, %9, %cst_6 [1] : vector<8x192xf32> to vector<8xf32>
    %11 = vector.shape_cast %10 : vector<8xf32> to vector<8x1xf32>
    %cst_7 = arith.constant 1.920000e+02 : f32
    %12 = vector.broadcast %cst_7 : f32 to vector<8x1xf32>
    %13 = arith.divf %11, %12 : vector<8x1xf32>
    %14 = vector.broadcast %6 : vector<8x1xf32> to vector<8x192xf32>
    %15 = arith.subf %0, %14 : vector<8x192xf32>
    %cst_8 = arith.constant 9.99999974E-6 : f32
    %16 = vector.broadcast %cst_8 : f32 to vector<8x1xf32>
    %17 = arith.addf %13, %16 : vector<8x1xf32>
    %18 = math.rsqrt %17 : vector<8x1xf32>
    %19 = vector.broadcast %18 : vector<8x1xf32> to vector<8x192xf32>
    %20 = arith.mulf %15, %19 : vector<8x192xf32>
    %21 = vector.broadcast %1 : vector<1x192xf32> to vector<8x192xf32>
    %22 = arith.mulf %20, %21 : vector<8x192xf32>
    %23 = vector.broadcast %2 : vector<1x192xf32> to vector<8x192xf32>
    %24 = arith.addf %22, %23 : vector<8x192xf32>
    %25 = arith.truncf %24 : vector<8x192xf32> to vector<8x192xbf16>
    %c0_9 = arith.constant 0 : index
    %c0_10 = arith.constant 0 : index
    %26 = vector.load %arg4[%c0_9, %c0_10] : memref<192x32xbf16, #tpu.memory_space<vmem>>, vector<192x32xbf16>
    %cst_11 = arith.constant dense<0.000000e+00> : vector<8x32xf32>
    %27 = tpu.matmul %25, %26, %cst_11 {dimension_numbers = #tpu.dot_dimension_numbers<[1], [0], [0], [1], [0, 0, 1, 1], [], []>} : vector<8x192xbf16>, vector<192x32xbf16>, vector<8x32xf32> -> vector<8x32xf32>
    %c0_12 = arith.constant 0 : index
    %c0_13 = arith.constant 0 : index
    %28 = vector.load %arg5[%c0_12, %c0_13] : memref<1x32xf32, #tpu.memory_space<vmem>>, vector<1x32xf32>
    %29 = vector.broadcast %28 : vector<1x32xf32> to vector<8x32xf32>
    %30 = arith.addf %27, %29 : vector<8x32xf32>
    %c0_14 = arith.constant 0 : index
    %c0_15 = arith.constant 0 : index
    %31 = vector.load %arg6[%c0_14, %c0_15] : memref<1x32xf32, #tpu.memory_space<vmem>>, vector<1x32xf32>
    %c0_16 = arith.constant 0 : index
    %c0_17 = arith.constant 0 : index
    %32 = vector.load %arg7[%c0_16, %c0_17] : memref<1x32xf32, #tpu.memory_space<vmem>>, vector<1x32xf32>
    %cst_18 = arith.constant dense<0.000000e+00> : vector<8xf32>
    %33 = vector.multi_reduction <add>, %30, %cst_18 [1] : vector<8x32xf32> to vector<8xf32>
    %34 = vector.shape_cast %33 : vector<8xf32> to vector<8x1xf32>
    %cst_19 = arith.constant 3.200000e+01 : f32
    %35 = vector.broadcast %cst_19 : f32 to vector<8x1xf32>
    %36 = arith.divf %34, %35 : vector<8x1xf32>
    %37 = vector.broadcast %36 : vector<8x1xf32> to vector<8x32xf32>
    %38 = arith.subf %30, %37 : vector<8x32xf32>
    %39 = arith.mulf %38, %38 : vector<8x32xf32>
    %cst_20 = arith.constant dense<0.000000e+00> : vector<8xf32>
    %40 = vector.multi_reduction <add>, %39, %cst_20 [1] : vector<8x32xf32> to vector<8xf32>
    %41 = vector.shape_cast %40 : vector<8xf32> to vector<8x1xf32>
    %cst_21 = arith.constant 3.200000e+01 : f32
    %42 = vector.broadcast %cst_21 : f32 to vector<8x1xf32>
    %43 = arith.divf %41, %42 : vector<8x1xf32>
    %44 = vector.broadcast %36 : vector<8x1xf32> to vector<8x32xf32>
    %45 = arith.subf %30, %44 : vector<8x32xf32>
    %cst_22 = arith.constant 9.99999974E-6 : f32
    %46 = vector.broadcast %cst_22 : f32 to vector<8x1xf32>
    %47 = arith.addf %43, %46 : vector<8x1xf32>
    %48 = math.rsqrt %47 : vector<8x1xf32>
    %49 = vector.broadcast %48 : vector<8x1xf32> to vector<8x32xf32>
    %50 = arith.mulf %45, %49 : vector<8x32xf32>
    %51 = vector.broadcast %31 : vector<1x32xf32> to vector<8x32xf32>
    %52 = arith.mulf %50, %51 : vector<8x32xf32>
    %53 = vector.broadcast %32 : vector<1x32xf32> to vector<8x32xf32>
    %54 = arith.addf %52, %53 : vector<8x32xf32>
    %c0_23 = arith.constant 0 : index
    %c0_24 = arith.constant 0 : index
    %55 = vector.load %arg8[%c0_23, %c0_24] : memref<8x32xf32, #tpu.memory_space<vmem>>, vector<8x32xf32>
    tpu.vector_store %arg8[%c0_23, %c0_24], %54 {strides = array<i32>} : memref<8x32xf32, #tpu.memory_space<vmem>>, vector<8x32xf32>,
    return
  }
  func.func @transform_0(%arg0: i32) -> (i32, i32) {
    %c0_i32 = arith.constant 0 : i32
    %c0_i32_0 = arith.constant 0 : i32
    return %arg0, %c0_i32 : i32, i32
  }
  func.func @transform_1(%arg0: i32) -> (i32, i32) {
    %c0_i32 = arith.constant 0 : i32
    %c0_i32_0 = arith.constant 0 : i32
    %c0_i32_1 = arith.constant 0 : i32
    return %c0_i32, %c0_i32_0 : i32, i32
  }
  func.func @transform_2(%arg0: i32) -> (i32, i32) {
    %c0_i32 = arith.constant 0 : i32
    %c0_i32_0 = arith.constant 0 : i32
    %c0_i32_1 = arith.constant 0 : i32
    return %c0_i32, %c0_i32_0 : i32, i32
  }
  func.func @transform_3(%arg0: i32) -> (i32, i32) {
    %c0_i32 = arith.constant 0 : i32
    %c0_i32_0 = arith.constant 0 : i32
    %c0_i32_1 = arith.constant 0 : i32
    return %c0_i32, %c0_i32_0 : i32, i32
  }
  func.func @transform_4(%arg0: i32) -> (i32, i32) {
    %c0_i32 = arith.constant 0 : i32
    %c0_i32_0 = arith.constant 0 : i32
    %c0_i32_1 = arith.constant 0 : i32
    return %c0_i32, %c0_i32_0 : i32, i32
  }
  func.func @transform_5(%arg0: i32) -> (i32, i32) {
    %c0_i32 = arith.constant 0 : i32
    %c0_i32_0 = arith.constant 0 : i32
    %c0_i32_1 = arith.constant 0 : i32
    return %c0_i32, %c0_i32_0 : i32, i32
  }
  func.func @transform_6(%arg0: i32) -> (i32, i32) {
    %c0_i32 = arith.constant 0 : i32
    %c0_i32_0 = arith.constant 0 : i32
    %c0_i32_1 = arith.constant 0 : i32
    return %c0_i32, %c0_i32_0 : i32, i32
  }
  func.func @transform_7(%arg0: i32) -> (i32, i32) {
    %c0_i32 = arith.constant 0 : i32
    %c0_i32_0 = arith.constant 0 : i32
    return %arg0, %c0_i32 : i32, i32
  }
}

</mosaic_0001>

<llo_original>
// kernel: tpu_custom_call.1
$region0: #{tpu_custom_call.1}
  #allocation0 [shape = 'u32[]', space=smem, size = 0x4, offset = 0x4, fixed_abs, tag = 'smem constant byte address 0x4 - core index']
  #allocation1 [shape = 'u32[144,128]{1,0:T(1,128)}', space=vmem, size = 0x12000, scoped, tag = 'internal scratch']
  %s0 = inlined_call_operand.vmem [shape: f32[8,192], index: 0, kind: input, shape index: {}]
  %s1 = inlined_call_operand.vmem [shape: f32[1,192], index: 1, kind: input, shape index: {}]
  %s2 = inlined_call_operand.vmem [shape: f32[1,192], index: 2, kind: input, shape index: {}]
  %s3 = inlined_call_operand.vmem [shape: bf16[192,32], index: 3, kind: input, shape index: {}]
  %s4 = inlined_call_operand.vmem [shape: f32[1,32], index: 4, kind: input, shape index: {}]
  %s5 = inlined_call_operand.vmem [shape: f32[1,32], index: 5, kind: input, shape index: {}]
  %s6 = inlined_call_operand.vmem [shape: f32[1,32], index: 6, kind: input, shape index: {}]
  %s7 = inlined_call_operand.hbm [shape: f32[8,32], index: 7, kind: output, shape index: {}]
  %s8 = sld [smem:[#allocation0]]
  $region38: #{tpu_custom_call.1} parent=0
    _
  %s10 = ssub.s32 1, %s8
  %s11 = scalar_select 0, %s10, %s8
  $region1: #{tpu_custom_call.1} parent=0
    #allocation2 [shape = 'u8[4096]{0}', space=vmem, size = 0x1000, scoped, tag = 'output window, operand 0, single buffered']
    #allocation3 [shape = 's32[1]{0}', space=sflag, size = 0x4, scoped, tag = 'scoped memory for tpu_custom_call.1']
    %12 = vsyncpa [#allocation3], 0
    // Predicated region
    $region2: #{tpu_custom_call.1} parent=1 // pred_check
      _
    $region3: #{tpu_custom_call.1} parent=1 // pred_check_branch
      %14 = sbr.rel (0) target = $region5
    $region4: #{tpu_custom_call.1} parent=1 // pred_region
      _
    $region5: #{tpu_custom_call.1} parent=1 // pred_fallthru
      _
    // Predicated region
    $region6: #{tpu_custom_call.1} parent=1 // pred_check
      _
    $region7: #{tpu_custom_call.1} parent=1 // pred_check_branch
      %16 = sbr.rel (0) target = $region9
    $region8: #{tpu_custom_call.1} parent=1 // pred_region
      _
    $region9: #{tpu_custom_call.1} parent=1 // pred_fallthru
      _
    // Predicated region
    $region10: #{tpu_custom_call.1} parent=1 // pred_check
      _
    $region11: #{tpu_custom_call.1} parent=1 // pred_check_branch
      %18 = sbr.rel (0) target = $region13
    $region12: #{tpu_custom_call.1} parent=1 // pred_region
      _
    $region13: #{tpu_custom_call.1} parent=1 // pred_fallthru
      _
    // Predicated region
    $region14: #{tpu_custom_call.1} parent=1 // pred_check
      _
    $region15: #{tpu_custom_call.1} parent=1 // pred_check_branch
      %20 = sbr.rel (0) target = $region17
    $region16: #{tpu_custom_call.1} parent=1 // pred_region
      _
    $region17: #{tpu_custom_call.1} parent=1 // pred_fallthru
      _
    // Predicated region
    $region18: #{tpu_custom_call.1} parent=1 // pred_check
      _
    $region19: #{tpu_custom_call.1} parent=1 // pred_check_branch
      %22 = sbr.rel (0) target = $region21
    $region20: #{tpu_custom_call.1} parent=1 // pred_region
      _
    $region21: #{tpu_custom_call.1} parent=1 // pred_fallthru
      _
    // Predicated region
    $region22: #{tpu_custom_call.1} parent=1 // pred_check
      _
    $region23: #{tpu_custom_call.1} parent=1 // pred_check_branch
      %24 = sbr.rel (0) target = $region25
    $region24: #{tpu_custom_call.1} parent=1 // pred_region
      _
    $region25: #{tpu_custom_call.1} parent=1 // pred_fallthru
      _
    // Predicated region
    $region26: #{tpu_custom_call.1} parent=1 // pred_check
      _
    $region27: #{tpu_custom_call.1} parent=1 // pred_check_branch
      %26 = sbr.rel (0) target = $region29
    $region28: #{tpu_custom_call.1} parent=1 // pred_region
      _
    $region29: #{tpu_custom_call.1} parent=1 // pred_fallthru
      _
    %v28 = vld [vmem:[%s0] sm:$0xff]
    %v29 = vld [vmem:[%s0 + $0x8] sm:$0xff]
    %v30 = vld [vmem:[%s1] sm:$0x3]
    %v31 = vld [vmem:[%s2] sm:$0x3]
    %vm32 = vcmask 523264
    %v33 = vsel %vm32, %v29, 0.0
    %v34 = vadd.f32 %v28, %v33
    %35 = vadd.xlane.f32.xlu0 %v34
    %v36 = vpop.xlane.xlu0 %35
    %v37 = vrcp.pop 192.0
    %v38 = vmul.f32 %v36, %v37
    %v39 = vsub.f32 %v28, %v38
    %v40 = vsub.f32 %v29, %v38
    %v41 = vmul.f32 %v39, %v39
    %v42 = vmul.f32 %v40, %v40
    %v43 = vsel %vm32, %v42, 0.0
    %v44 = vadd.f32 %v41, %v43
    %45 = vadd.xlane.f32.xlu0 %v44
    %v46 = vpop.xlane.xlu0 %45
    %v47 = vmul.f32 %v46, %v37
    %v48 = vadd.f32 %v47, 1e-05
    %v49 = vrsqrt.pop %v48
    %v50 = vmul.f32 %v39, %v49
    %v51 = vmul.f32 %v40, %v49
    %v53 = vlaneseq
    %v54 = vshrl.u32 %v53, 7
    %v55 = vsub.s32 0, %v54
    %v56 = vrot.slane %v30, %v55
    %v57 = vlaneseq
    %v58 = vshrl.u32 %v57, 7
    %v59 = vsub.s32 1, %v58
    %v60 = vrot.slane %v30, %v59
    %v63 = vmul.f32 %v50, %v56
    %v64 = vmul.f32 %v51, %v60
    %v66 = vlaneseq
    %v67 = vshrl.u32 %v66, 7
    %v68 = vsub.s32 0, %v67
    %v69 = vrot.slane %v31, %v68
    %v70 = vlaneseq
    %v71 = vshrl.u32 %v70, 7
    %v72 = vsub.s32 1, %v71
    %v73 = vrot.slane %v31, %v72
    %v76 = vadd.f32 %v63, %v69
    %v77 = vadd.f32 %v64, %v73
    %v78 = vpack.c.bf16 %v76, %v76
    %v79 = vpack.c.bf16 %v77, %v77
    %v80 = vld [vmem:[%s3] sm:$0xf]
    %v81 = vld [vmem:[%s3 + $0x4] sm:$0xf]
    %v82 = vld [vmem:[%s3 + $0x8] sm:$0xf]
    %v83 = vld [vmem:[%s3 + $0xc] sm:$0xf]
    %v84 = vld [vmem:[%s3 + $0x10] sm:$0xf]
    %v85 = vld [vmem:[%s3 + $0x14] sm:$0xf]
    %v86 = vld [vmem:[%s3 + $0x18] sm:$0xf]
    %v87 = vld [vmem:[%s3 + $0x1c] sm:$0xf]
    %v88 = vld [vmem:[%s3 + $0x20] sm:$0xf]
    %v89 = vld [vmem:[%s3 + $0x24] sm:$0xf]
    %v90 = vld [vmem:[%s3 + $0x28] sm:$0xf]
    %v91 = vld [vmem:[%s3 + $0x2c] sm:$0xf]
    %v92 = vld [vmem:[%s3 + $0x30] sm:$0xf]
    %v93 = vld [vmem:[%s3 + $0x34] sm:$0xf]
    %v94 = vld [vmem:[%s3 + $0x38] sm:$0xf]
    %v95 = vld [vmem:[%s3 + $0x3c] sm:$0xf]
    %v96 = vld [vmem:[%s3 + $0x40] sm:$0xf]
    %v97 = vld [vmem:[%s3 + $0x44] sm:$0xf]
    %v98 = vld [vmem:[%s3 + $0x48] sm:$0xf]
    %v99 = vld [vmem:[%s3 + $0x4c] sm:$0xf]
    %v100 = vld [vmem:[%s3 + $0x50] sm:$0xf]
    %v101 = vld [vmem:[%s3 + $0x54] sm:$0xf]
    %v102 = vld [vmem:[%s3 + $0x58] sm:$0xf]
    %v103 = vld [vmem:[%s3 + $0x5c] sm:$0xf]
    %v104 = vld [vmem:[%s4] sm:$0x1]
    %v106 = vlaneseq
    %v107 = vshrl.u32 %v106, 7
    %v108 = vsub.s32 0, %v107
    %v109 = vrot.slane %v104, %v108
    %v135 = vunpack.c.l.b16 %v80
    %v136 = vunpack.c.l.b16 %v81
    %v137 = vunpack.c.l.b16 %v82
    %v138 = vunpack.c.l.b16 %v83
    %v139 = vunpack.c.l.b16 %v84
    %v140 = vunpack.c.l.b16 %v85
    %v141 = vunpack.c.l.b16 %v86
    %v142 = vunpack.c.l.b16 %v87
    %v143 = vunpack.c.l.b16 %v88
    %v144 = vunpack.c.l.b16 %v89
    %v145 = vunpack.c.l.b16 %v90
    %v146 = vunpack.c.l.b16 %v91
    %v147 = vunpack.c.l.b16 %v92
    %v148 = vunpack.c.l.b16 %v93
    %v149 = vunpack.c.l.b16 %v94
    %v150 = vunpack.c.l.b16 %v95
    %v151 = vunpack.c.l.b16 %v96
    %v152 = vunpack.c.l.b16 %v97
    %v153 = vunpack.c.l.b16 %v98
    %v154 = vunpack.c.l.b16 %v99
    %v155 = vunpack.c.l.b16 %v100
    %v156 = vunpack.c.l.b16 %v101
    %v157 = vunpack.c.l.b16 %v102
    %v158 = vunpack.c.l.b16 %v103
    %v159 = vpack.c.b16 %v136, %v135
    %v160 = vpack.c.b16 %v138, %v137
    %v161 = vpack.c.b16 %v140, %v139
    %v162 = vpack.c.b16 %v142, %v141
    %v163 = vpack.c.b16 %v144, %v143
    %v164 = vpack.c.b16 %v146, %v145
    %v165 = vpack.c.b16 %v148, %v147
    %v166 = vpack.c.b16 %v150, %v149
    %v167 = vpack.c.b16 %v152, %v151
    %v168 = vpack.c.b16 %v154, %v153
    %v169 = vpack.c.b16 %v156, %v155
    %v170 = vpack.c.b16 %v158, %v157
    %v184 = vsel %vm32, %v79, 0
    %186 = vmatprep.subr.bf16.mxu0 0
    %187 = vmatpush1.bf16.msra.mxu0 %v166
    %188 = vmatprep.subr.bf16.mxu0 0
    %189 = vmatpush1.bf16.msra.mxu0 %v165
    %190 = vmatprep.subr.bf16.mxu0 0
    %191 = vmatpush1.bf16.msra.mxu0 %v164
    %192 = vmatprep.subr.bf16.mxu0 0
    %193 = vmatpush1.bf16.msra.mxu0 %v163
    %194 = vmatprep.subr.bf16.mxu0 0
    %195 = vmatpush1.bf16.msra.mxu0 %v162
    %196 = vmatprep.subr.bf16.mxu0 0
    %197 = vmatpush1.bf16.msra.mxu0 %v161
    %198 = vmatprep.subr.bf16.mxu0 0
    %199 = vmatpush1.bf16.msra.mxu0 %v160
    %200 = vmatprep.subr.bf16.mxu0 0
    %201 = vmatpush1.bf16.msra.mxu0 %v159
    %202 = vmatprep.subr.bf16.mxu0 0
    %203 = vmatpush2.bf16.msra.mxu0 0
    %204 = vmatprep.subr.bf16.mxu0 0
    %205 = vmatpush2.bf16.msra.mxu0 0
    %206 = vmatprep.subr.bf16.mxu0 0
    %207 = vmatpush2.bf16.msra.mxu0 0
    %208 = vmatprep.subr.bf16.mxu0 0
    %209 = vmatpush2.bf16.msra.mxu0 0
    %210 = vmatprep.subr.bf16.mxu0 0
    %211 = vmatpush2.bf16.msra.mxu0 %v170
    %212 = vmatprep.subr.bf16.mxu0 0
    %213 = vmatpush2.bf16.msra.mxu0 %v169
    %214 = vmatprep.subr.bf16.mxu0 0
    %215 = vmatpush2.bf16.msra.mxu0 %v168
    %216 = vmatprep.subr.bf16.mxu0 0
    %217 = vmatpush2.bf16.msra.mxu0 %v167
    %218 = vmatprep.mubr.bf16.mxu0 %v184
    %219 = vmatmul.mubr.bf16.gmra.mxu0 %v78
    %v220 = vpop.f32.mrf.mxu0
    %v221 = vadd.f32 %v109, %v220
    %v222 = vpop.f32.mrf.mxu0
    %v223 = vpop.f32.mrf.mxu0
    %v224 = vpop.f32.mrf.mxu0
    %225 = vdwg.mxu0
    %v226 = vld [vmem:[%s5] sm:$0x1]
    %v227 = vld [vmem:[%s6] sm:$0x1]
    %vm228 = vcmask 261120
    %v229 = vsel %vm228, %v221, 0.0
    %230 = vadd.xlane.f32.xlu0 %v229
    %v231 = vpop.xlane.xlu0 %230
    %v232 = vrcp.pop 32.0
    %v233 = vmul.f32 %v231, %v232
    %v234 = vsub.f32 %v221, %v233
    %v235 = vmul.f32 %v234, %v234
    %v236 = vsel %vm228, %v235, 0.0
    %237 = vadd.xlane.f32.xlu0 %v236
    %v238 = vpop.xlane.xlu0 %237
    %v239 = vmul.f32 %v238, %v232
    %v240 = vadd.f32 %v239, 1e-05
    %v241 = vrsqrt.pop %v240
    %v242 = vmul.f32 %v234, %v241
    %v244 = vlaneseq
    %v245 = vshrl.u32 %v244, 7
    %v246 = vsub.s32 0, %v245
    %v247 = vrot.slane %v226, %v246
    %v249 = vmul.f32 %v242, %v247
    %v251 = vlaneseq
    %v252 = vshrl.u32 %v251, 7
    %v253 = vsub.s32 0, %v252
    %v254 = vrot.slane %v227, %v253
    %v256 = vadd.f32 %v249, %v254
    %257 = vst.msk [vmem:[#allocation2] sm:$0xff] %vm228, %v256
    // Predicated region
    $region30: #{tpu_custom_call.1} parent=1 // pred_check
      _
    $region31: #{tpu_custom_call.1} parent=1 // pred_check_branch
      %259 = sbr.rel (0) target = $region33
    $region32: #{tpu_custom_call.1} parent=1 // pred_region
      %s261 = ssub.s32 128, 128
      %262 = vsyncadd [#allocation3], %s261
      %s264 = sshll.u32 [#allocation2], 4
      %s265 = int_to_ptr.vmem [resolvable:$true] %s264
      %267 = dma.vmem_to_hbm [thread:$0]  %s265, 128, %s7, [#allocation3]
    $region33: #{tpu_custom_call.1} parent=1 // pred_fallthru
      _
    // Predicated region
    $region34: #{tpu_custom_call.1} parent=1 // pred_check
      _
    $region35: #{tpu_custom_call.1} parent=1 // pred_check_branch
      %269 = sbr.rel (0) target = $region37
    $region36: #{tpu_custom_call.1} parent=1 // pred_region
      %270 = dma.done [#allocation3], 128
    $region37: #{tpu_custom_call.1} parent=1 // pred_fallthru
      _
    %271 = vsyncpa [#allocation3], 1

</llo_original>
